<compile_context>
chip_gen: v7x
topology: tpu7x:2x2x1
jax: 0.10.0
libtpu: 0.0.40
codegen_flags: <defaults>
</compile_context>

<pallas_src>
from functools import partial

import jax
import jax.numpy as jnp
from jax.experimental import pallas as pl
from jax.experimental.pallas import tpu as pltpu  # noqa: F401  (TPU backend)

LANE = 128      # TPU lane width
OUT_PAD = 8     # padded column count for the tiny final weight


def mlp_kernel(x_ref, w1_ref, w2_ref, w3_ref, b_ref, o_ref):
    x = x_ref[...]          # (N, 2)        f32
    w1 = w1_ref[...]        # (2, 128)      f32, cols >= 100 are zero
    b = b_ref[...]          # (3, 128)      f32, packed [b1; b2; b3], zero-padded

    # ---- layer 1 on the VPU: K=2 outer-product, avoids a degenerate MXU matmul.
    h1 = x[:, 0:1] * w1[0:1, :] + x[:, 1:2] * w1[1:1 + 1, :] + b[0:1, :]
    h1 = jnp.maximum(h1, 0.0)                                  # (N, 128), cols>=100 zero

    # ---- layer 2 on the MXU: (N,128) @ (128,128)
    h2 = jnp.dot(h1, w2_ref[...], preferred_element_type=jnp.float32)
    h2 = jnp.maximum(h2 + b[1:2, :], 0.0)                      # (N, 128), cols>=20 zero

    # ---- layer 3 on the MXU: (N,128) @ (128,8); write real (N,out_dim) directly.
    w3_cols = w3_ref.shape[1]          # 8 (static)
    out_dim = o_ref.shape[1]           # 2 (static)
    out = jnp.dot(h2, w3_ref[...], preferred_element_type=jnp.float32)   # (N, 8)
    out = out + b[2:3, :w3_cols]
    o_ref[...] = out[:, :out_dim].astype(o_ref.dtype)          # (N, out_dim)


def prepare_params(params):
    """One-time zero-padding / packing of the PyTorch-equivalent params.

    params = (w1, b1, w2, b2, w3, b3) with weights already transposed to
    [in, out]. Returns (padded_arrays, out_dim).
    """
    w1, b1, w2, b2, w3, b3 = params
    in_f, h1_dim = w1.shape
    h2_dim = w2.shape[1]
    out_dim = w3.shape[1]

    # Kernel hard-codes in_features == 2 and assumes small hidden/out dims:
    # fail loudly for any other Net configuration.
    assert in_f == 2, f"kernel assumes in_features == 2, got {in_f}"
    assert h1_dim <= LANE and h2_dim <= LANE, "hidden dims must be <= 128"
    assert out_dim <= OUT_PAD, f"out_dim must be <= {OUT_PAD}"
    assert w2.shape[0] == h1_dim and w3.shape[0] == h2_dim

    w1p = jnp.zeros((in_f, LANE), jnp.float32).at[:, :h1_dim].set(w1)
    w2p = jnp.zeros((LANE, LANE), jnp.float32).at[:h1_dim, :h2_dim].set(w2)
    w3p = jnp.zeros((LANE, OUT_PAD), jnp.float32).at[:h2_dim, :out_dim].set(w3)
    bpack = jnp.zeros((3, LANE), jnp.float32)
    bpack = bpack.at[0, :h1_dim].set(b1.reshape(-1))
    bpack = bpack.at[1, :h2_dim].set(b2.reshape(-1))
    bpack = bpack.at[2, :out_dim].set(b3.reshape(-1))
    return (w1p, w2p, w3p, bpack), out_dim


@partial(jax.jit, static_argnames=("out_dim",))
def _net_forward_padded(x, w1p, w2p, w3p, bpack, *, out_dim):
    assert x.shape[1] == 2, "kernel assumes in_features == 2"
    n = x.shape[0]

    # Tiny workload: everything VMEM-resident, single grid point.
    full = lambda a: pl.BlockSpec(a.shape, lambda: (0,) * a.ndim)

    return pl.pallas_call(
        mlp_kernel,
        out_shape=jax.ShapeDtypeStruct((n, out_dim), jnp.float32),
        in_specs=[full(x), full(w1p), full(w2p), full(w3p), full(bpack)],
        out_specs=pl.BlockSpec((n, out_dim), lambda: (0, 0)),
    )(x, w1p, w2p, w3p, bpack)


def net_forward(x, padded_params, out_dim):
    """Fused forward pass of Net. x: [N, 2] f32 -> [N, out_dim] f32."""
    w1p, w2p, w3p, bpack = padded_params
    return _net_forward_padded(x, w1p, w2p, w3p, bpack, out_dim=out_dim)


# ---------------------------------------------------------------------------
# Param init (PyTorch nn.Linear default) and pure-JAX reference.
# ---------------------------------------------------------------------------
def init_linear(key, in_f, out_f):
    """U(-1/sqrt(in_f), 1/sqrt(in_f)); weight returned as [in_f, out_f]."""
    kw, kb = jax.random.split(key)
    bound = 1.0 / jnp.sqrt(jnp.float32(in_f))
    w = jax.random.uniform(kw, (in_f, out_f), jnp.float32, -bound, bound)
    b = jax.random.uniform(kb, (out_f,), jnp.float32, -bound, bound)
    return w, b


def make_params(key, in_feature=2, out=2):
    k1, k2, k3 = jax.random.split(key, 3)
    w1, b1 = init_linear(k1, in_feature, 100)   # hidden1
    w2, b2 = init_linear(k2, 100, 20)           # hidden2
    w3, b3 = init_linear(k3, 20, out)           # predict
    return (w1, b1, w2, b2, w3, b3)


def net_forward_ref(x, params):
    w1, b1, w2, b2, w3, b3 = params
    h1 = jnp.maximum(x @ w1 + b1[None, :], 0.0)
    h2 = jnp.maximum(h1 @ w2 + b2[None, :], 0.0)
    return h2 @ w3 + b3[None, :]


if __name__ == "__main__":
    key = jax.random.PRNGKey(0)
    k_data0, k_data1, k_params = jax.random.split(key, 3)

    # Mirror the script's data: x0 ~ N(+2, 1), x1 ~ N(-2, 1), each [100, 2],
    # concatenated along dim 0 -> [200, 2] float32.
    x0 = 2.0 + jax.random.normal(k_data0, (100, 2), jnp.float32)
    x1 = -2.0 + jax.random.normal(k_data1, (100, 2), jnp.float32)
    x = jnp.concatenate([x0, x1], axis=0)

    params = make_params(k_params, in_feature=2, out=2)

    # Pad/pack once at init; the jitted forward only launches the kernel.
    padded_params, out_dim = prepare_params(params)

    y = net_forward(x, padded_params, out_dim)
    jax.block_until_ready(y)

    # Sanity check against the pure-JAX reference.
    y_ref = net_forward_ref(x, params)
    assert y.shape == (200, 2)
    assert jnp.allclose(y, y_ref, atol=1e-5, rtol=1e-5)

    print("KERNEL_OK")
</pallas_src>

<mosaic_0001>
module attributes {stable_mosaic.version = 11 : i64} {
  func.func @mlp_kernel(%arg0: memref<200x2xf32, #tpu.memory_space<vmem>>, %arg1: memref<2x128xf32, #tpu.memory_space<vmem>>, %arg2: memref<128x128xf32, #tpu.memory_space<vmem>>, %arg3: memref<128x8xf32, #tpu.memory_space<vmem>>, %arg4: memref<3x128xf32, #tpu.memory_space<vmem>>, %arg5: memref<200x2xf32, #tpu.memory_space<vmem>>) attributes {dimension_semantics = [], scalar_prefetch = 0 : i64, scratch_operands = 0 : i64, tpu.core_type = #tpu.core_type<tc>} {
    %c0 = arith.constant 0 : index
    %c0_0 = arith.constant 0 : index
    %0 = vector.load %arg0[%c0, %c0_0] : memref<200x2xf32, #tpu.memory_space<vmem>>, vector<200x2xf32>
    %c0_1 = arith.constant 0 : index
    %c0_2 = arith.constant 0 : index
    %1 = vector.load %arg1[%c0_1, %c0_2] : memref<2x128xf32, #tpu.memory_space<vmem>>, vector<2x128xf32>
    %c0_3 = arith.constant 0 : index
    %c0_4 = arith.constant 0 : index
    %2 = vector.load %arg4[%c0_3, %c0_4] : memref<3x128xf32, #tpu.memory_space<vmem>>, vector<3x128xf32>
    %3 = vector.extract_strided_slice %0 {offsets = [0, 0], sizes = [200, 1], strides = [1, 1]} : vector<200x2xf32> to vector<200x1xf32>
    %4 = vector.extract_strided_slice %1 {offsets = [0, 0], sizes = [1, 128], strides = [1, 1]} : vector<2x128xf32> to vector<1x128xf32>
    %5 = vector.broadcast %3 : vector<200x1xf32> to vector<200x128xf32>
    %6 = vector.broadcast %4 : vector<1x128xf32> to vector<200x128xf32>
    %7 = arith.mulf %5, %6 : vector<200x128xf32>
    %8 = vector.extract_strided_slice %0 {offsets = [0, 1], sizes = [200, 1], strides = [1, 1]} : vector<200x2xf32> to vector<200x1xf32>
    %9 = vector.extract_strided_slice %1 {offsets = [1, 0], sizes = [1, 128], strides = [1, 1]} : vector<2x128xf32> to vector<1x128xf32>
    %10 = vector.broadcast %8 : vector<200x1xf32> to vector<200x128xf32>
    %11 = vector.broadcast %9 : vector<1x128xf32> to vector<200x128xf32>
    %12 = arith.mulf %10, %11 : vector<200x128xf32>
    %13 = arith.addf %7, %12 : vector<200x128xf32>
    %14 = vector.extract_strided_slice %2 {offsets = [0, 0], sizes = [1, 128], strides = [1, 1]} : vector<3x128xf32> to vector<1x128xf32>
    %15 = vector.broadcast %14 : vector<1x128xf32> to vector<200x128xf32>
    %16 = arith.addf %13, %15 : vector<200x128xf32>
    %cst = arith.constant 0.000000e+00 : f32
    %17 = vector.broadcast %cst : f32 to vector<200x128xf32>
    %18 = arith.maximumf %16, %17 : vector<200x128xf32>
    %c0_5 = arith.constant 0 : index
    %c0_6 = arith.constant 0 : index
    %19 = vector.load %arg2[%c0_5, %c0_6] : memref<128x128xf32, #tpu.memory_space<vmem>>, vector<128x128xf32>
    %cst_7 = arith.constant dense<0.000000e+00> : vector<200x128xf32>
    %20 = tpu.matmul %18, %19, %cst_7 {dimension_numbers = #tpu.dot_dimension_numbers<[1], [0], [0], [1], [0, 0, 1, 1], [], []>} : vector<200x128xf32>, vector<128x128xf32>, vector<200x128xf32> -> vector<200x128xf32>
    %21 = vector.extract_strided_slice %2 {offsets = [1, 0], sizes = [1, 128], strides = [1, 1]} : vector<3x128xf32> to vector<1x128xf32>
    %22 = vector.broadcast %21 : vector<1x128xf32> to vector<200x128xf32>
    %23 = arith.addf %20, %22 : vector<200x128xf32>
    %cst_8 = arith.constant 0.000000e+00 : f32
    %24 = vector.broadcast %cst_8 : f32 to vector<200x128xf32>
    %25 = arith.maximumf %23, %24 : vector<200x128xf32>
    %c0_9 = arith.constant 0 : index
    %c0_10 = arith.constant 0 : index
    %26 = vector.load %arg3[%c0_9, %c0_10] : memref<128x8xf32, #tpu.memory_space<vmem>>, vector<128x8xf32>
    %cst_11 = arith.constant dense<0.000000e+00> : vector<200x8xf32>
    %27 = tpu.matmul %25, %26, %cst_11 {dimension_numbers = #tpu.dot_dimension_numbers<[1], [0], [0], [1], [0, 0, 1, 1], [], []>} : vector<200x128xf32>, vector<128x8xf32>, vector<200x8xf32> -> vector<200x8xf32>
    %28 = vector.extract_strided_slice %2 {offsets = [2, 0], sizes = [1, 8], strides = [1, 1]} : vector<3x128xf32> to vector<1x8xf32>
    %29 = vector.broadcast %28 : vector<1x8xf32> to vector<200x8xf32>
    %30 = arith.addf %27, %29 : vector<200x8xf32>
    %31 = vector.extract_strided_slice %30 {offsets = [0, 0], sizes = [200, 2], strides = [1, 1]} : vector<200x8xf32> to vector<200x2xf32>
    %c0_12 = arith.constant 0 : index
    %c0_13 = arith.constant 0 : index
    %32 = vector.load %arg5[%c0_12, %c0_13] : memref<200x2xf32, #tpu.memory_space<vmem>>, vector<200x2xf32>
    tpu.vector_store %arg5[%c0_12, %c0_13], %31 {strides = array<i32>} : memref<200x2xf32, #tpu.memory_space<vmem>>, vector<200x2xf32>,
    return
  }
}

</mosaic_0001>

<llo_original>
// kernel: _net_forward_padded.1
$region0: #{_net_forward_padded.1}
  #allocation0 [shape = 'u32[]', space=smem, size = 0x4, offset = 0x4, fixed_abs, tag = 'smem constant byte address 0x4 - core index']
  #allocation1 [shape = 'u32[144,128]{1,0:T(1,128)}', space=vmem, size = 0x12000, scoped, tag = 'internal scratch']
  %s0 = inlined_call_operand.vmem [shape: f32[200,2], index: 0, kind: input, shape index: {}]
  %s1 = inlined_call_operand.vmem [shape: f32[2,128], index: 1, kind: input, shape index: {}]
  %s2 = inlined_call_operand.vmem [shape: f32[128,128], index: 2, kind: input, shape index: {}]
  %s3 = inlined_call_operand.vmem [shape: f32[128,8], index: 3, kind: input, shape index: {}]
  %s4 = inlined_call_operand.vmem [shape: f32[3,128], index: 4, kind: input, shape index: {}]
  %s5 = inlined_call_operand.vmem [shape: f32[200,2], index: 5, kind: output, shape index: {}]
  %s6 = sld [smem:[#allocation0]]
  $region30: #{_net_forward_padded.1} parent=0
    _
  %s8 = ssub.s32 1, %s6
  %s9 = scalar_select 0, %s8, %s6
  // Predicated region
  $region2: #{_net_forward_padded.1} parent=0 // pred_check
    _
  $region3: #{_net_forward_padded.1} parent=0 // pred_check_branch
    %11 = sbr.rel (0) target = $region5
  $region4: #{_net_forward_padded.1} parent=0 // pred_region
    _
  $region5: #{_net_forward_padded.1} parent=0 // pred_fallthru
    _
  // Predicated region
  $region6: #{_net_forward_padded.1} parent=0 // pred_check
    _
  $region7: #{_net_forward_padded.1} parent=0 // pred_check_branch
    %13 = sbr.rel (0) target = $region9
  $region8: #{_net_forward_padded.1} parent=0 // pred_region
    _
  $region9: #{_net_forward_padded.1} parent=0 // pred_fallthru
    _
  // Predicated region
  $region10: #{_net_forward_padded.1} parent=0 // pred_check
    _
  $region11: #{_net_forward_padded.1} parent=0 // pred_check_branch
    %15 = sbr.rel (0) target = $region13
  $region12: #{_net_forward_padded.1} parent=0 // pred_region
    _
  $region13: #{_net_forward_padded.1} parent=0 // pred_fallthru
    _
  // Predicated region
  $region14: #{_net_forward_padded.1} parent=0 // pred_check
    _
  $region15: #{_net_forward_padded.1} parent=0 // pred_check_branch
    %17 = sbr.rel (0) target = $region17
  $region16: #{_net_forward_padded.1} parent=0 // pred_region
    _
  $region17: #{_net_forward_padded.1} parent=0 // pred_fallthru
    _
  // Predicated region
  $region18: #{_net_forward_padded.1} parent=0 // pred_check
    _
  $region19: #{_net_forward_padded.1} parent=0 // pred_check_branch
    %19 = sbr.rel (0) target = $region21
  $region20: #{_net_forward_padded.1} parent=0 // pred_region
    _
  $region21: #{_net_forward_padded.1} parent=0 // pred_fallthru
    _
  %v20 = vld [vmem:[%s0] sm:$0xff]
  %v21 = vld [vmem:[%s0 + $0x8] sm:$0xff]
  %v22 = vld [vmem:[%s0 + $0x10] sm:$0xff]
  %v23 = vld [vmem:[%s0 + $0x18] sm:$0xff]
  %v24 = vld [vmem:[%s0 + $0x20] sm:$0xff]
  %v25 = vld [vmem:[%s0 + $0x28] sm:$0xff]
  %v26 = vld [vmem:[%s0 + $0x30] sm:$0xff]
  %v27 = vld [vmem:[%s0 + $0x38] sm:$0xff]
  %v28 = vld [vmem:[%s0 + $0x40] sm:$0xff]
  %v29 = vld [vmem:[%s0 + $0x48] sm:$0xff]
  %v30 = vld [vmem:[%s0 + $0x50] sm:$0xff]
  %v31 = vld [vmem:[%s0 + $0x58] sm:$0xff]
  %v32 = vld [vmem:[%s0 + $0x60] sm:$0xff]
  %v33 = vld [vmem:[%s0 + $0x68] sm:$0xff]
  %v34 = vld [vmem:[%s0 + $0x70] sm:$0xff]
  %v35 = vld [vmem:[%s0 + $0x78] sm:$0xff]
  %v36 = vld [vmem:[%s0 + $0x80] sm:$0xff]
  %v37 = vld [vmem:[%s0 + $0x88] sm:$0xff]
  %v38 = vld [vmem:[%s0 + $0x90] sm:$0xff]
  %v39 = vld [vmem:[%s0 + $0x98] sm:$0xff]
  %v40 = vld [vmem:[%s0 + $0xa0] sm:$0xff]
  %v41 = vld [vmem:[%s0 + $0xa8] sm:$0xff]
  %v42 = vld [vmem:[%s0 + $0xb0] sm:$0xff]
  %v43 = vld [vmem:[%s0 + $0xb8] sm:$0xff]
  %v44 = vld [vmem:[%s0 + $0xc0] sm:$0xff]
  %v45 = vld [vmem:[%s1] sm:$0x3]
  %v46 = vld [vmem:[%s4] sm:$0x7]
  %48 = vset.pattern.permute.xlu0 0
  %49 = vperm.xlu0 %48, %v20
  %v50 = vpop.permute.xlu0 %49
  %53 = vset.pattern.permute.xlu0 0
  %54 = vperm.xlu0 %53, %v21
  %v55 = vpop.permute.xlu0 %54
  %58 = vset.pattern.permute.xlu0 0
  %59 = vperm.xlu0 %58, %v22
  %v60 = vpop.permute.xlu0 %59
  %63 = vset.pattern.permute.xlu0 0
  %64 = vperm.xlu0 %63, %v23
  %v65 = vpop.permute.xlu0 %64
  %68 = vset.pattern.permute.xlu0 0
  %69 = vperm.xlu0 %68, %v24
  %v70 = vpop.permute.xlu0 %69
  %73 = vset.pattern.permute.xlu0 0
  %74 = vperm.xlu0 %73, %v25
  %v75 = vpop.permute.xlu0 %74
  %78 = vset.pattern.permute.xlu0 0
  %79 = vperm.xlu0 %78, %v26
  %v80 = vpop.permute.xlu0 %79
  %83 = vset.pattern.permute.xlu0 0
  %84 = vperm.xlu0 %83, %v27
  %v85 = vpop.permute.xlu0 %84
  %88 = vset.pattern.permute.xlu0 0
  %89 = vperm.xlu0 %88, %v28
  %v90 = vpop.permute.xlu0 %89
  %93 = vset.pattern.permute.xlu0 0
  %94 = vperm.xlu0 %93, %v29
  %v95 = vpop.permute.xlu0 %94
  %98 = vset.pattern.permute.xlu0 0
  %99 = vperm.xlu0 %98, %v30
  %v100 = vpop.permute.xlu0 %99
  %103 = vset.pattern.permute.xlu0 0
  %104 = vperm.xlu0 %103, %v31
  %v105 = vpop.permute.xlu0 %104
  %108 = vset.pattern.permute.xlu0 0
  %109 = vperm.xlu0 %108, %v32
  %v110 = vpop.permute.xlu0 %109
  %113 = vset.pattern.permute.xlu0 0
  %114 = vperm.xlu0 %113, %v33
  %v115 = vpop.permute.xlu0 %114
  %118 = vset.pattern.permute.xlu0 0
  %119 = vperm.xlu0 %118, %v34
  %v120 = vpop.permute.xlu0 %119
  %123 = vset.pattern.permute.xlu0 0
  %124 = vperm.xlu0 %123, %v35
  %v125 = vpop.permute.xlu0 %124
  %128 = vset.pattern.permute.xlu0 0
  %129 = vperm.xlu0 %128, %v36
  %v130 = vpop.permute.xlu0 %129
  %133 = vset.pattern.permute.xlu0 0
  %134 = vperm.xlu0 %133, %v37
  %v135 = vpop.permute.xlu0 %134
  %138 = vset.pattern.permute.xlu0 0
  %139 = vperm.xlu0 %138, %v38
  %v140 = vpop.permute.xlu0 %139
  %143 = vset.pattern.permute.xlu0 0
  %144 = vperm.xlu0 %143, %v39
  %v145 = vpop.permute.xlu0 %144
  %148 = vset.pattern.permute.xlu0 0
  %149 = vperm.xlu0 %148, %v40
  %v150 = vpop.permute.xlu0 %149
  %153 = vset.pattern.permute.xlu0 0
  %154 = vperm.xlu0 %153, %v41
  %v155 = vpop.permute.xlu0 %154
  %158 = vset.pattern.permute.xlu0 0
  %159 = vperm.xlu0 %158, %v42
  %v160 = vpop.permute.xlu0 %159
  %163 = vset.pattern.permute.xlu0 0
  %164 = vperm.xlu0 %163, %v43
  %v165 = vpop.permute.xlu0 %164
  %168 = vset.pattern.permute.xlu0 0
  %169 = vperm.xlu0 %168, %v44
  %v170 = vpop.permute.xlu0 %169
  %v172 = vlaneseq
  %v173 = vshrl.u32 %v172, 7
  %v174 = vsub.s32 0, %v173
  %v175 = vrot.slane %v45, %v174
  %v176 = vmul.f32 %v50, %v175
  %v177 = vmul.f32 %v55, %v175
  %v178 = vmul.f32 %v60, %v175
  %v179 = vmul.f32 %v65, %v175
  %v180 = vmul.f32 %v70, %v175
  %v181 = vmul.f32 %v75, %v175
  %v182 = vmul.f32 %v80, %v175
  %v183 = vmul.f32 %v85, %v175
  %v184 = vmul.f32 %v90, %v175
  %v185 = vmul.f32 %v95, %v175
  %v186 = vmul.f32 %v100, %v175
  %v187 = vmul.f32 %v105, %v175
  %v188 = vmul.f32 %v110, %v175
  %v189 = vmul.f32 %v115, %v175
  %v190 = vmul.f32 %v120, %v175
  %v191 = vmul.f32 %v125, %v175
  %v192 = vmul.f32 %v130, %v175
  %v193 = vmul.f32 %v135, %v175
  %v194 = vmul.f32 %v140, %v175
  %v195 = vmul.f32 %v145, %v175
  %v196 = vmul.f32 %v150, %v175
  %v197 = vmul.f32 %v155, %v175
  %v198 = vmul.f32 %v160, %v175
  %v199 = vmul.f32 %v165, %v175
  %v200 = vmul.f32 %v170, %v175
  %201 = vset.pattern.permute.xlu0 1
  %202 = vperm.xlu0 %201, %v20
  %v203 = vpop.permute.xlu0 %202
  %205 = vset.pattern.permute.xlu0 1
  %206 = vperm.xlu0 %205, %v21
  %v207 = vpop.permute.xlu0 %206
  %209 = vset.pattern.permute.xlu0 1
  %210 = vperm.xlu0 %209, %v22
  %v211 = vpop.permute.xlu0 %210
  %213 = vset.pattern.permute.xlu0 1
  %214 = vperm.xlu0 %213, %v23
  %v215 = vpop.permute.xlu0 %214
  %217 = vset.pattern.permute.xlu0 1
  %218 = vperm.xlu0 %217, %v24
  %v219 = vpop.permute.xlu0 %218
  %221 = vset.pattern.permute.xlu0 1
  %222 = vperm.xlu0 %221, %v25
  %v223 = vpop.permute.xlu0 %222
  %225 = vset.pattern.permute.xlu0 1
  %226 = vperm.xlu0 %225, %v26
  %v227 = vpop.permute.xlu0 %226
  %229 = vset.pattern.permute.xlu0 1
  %230 = vperm.xlu0 %229, %v27
  %v231 = vpop.permute.xlu0 %230
  %233 = vset.pattern.permute.xlu0 1
  %234 = vperm.xlu0 %233, %v28
  %v235 = vpop.permute.xlu0 %234
  %237 = vset.pattern.permute.xlu0 1
  %238 = vperm.xlu0 %237, %v29
  %v239 = vpop.permute.xlu0 %238
  %241 = vset.pattern.permute.xlu0 1
  %242 = vperm.xlu0 %241, %v30
  %v243 = vpop.permute.xlu0 %242
  %245 = vset.pattern.permute.xlu0 1
  %246 = vperm.xlu0 %245, %v31
  %v247 = vpop.permute.xlu0 %246
  %249 = vset.pattern.permute.xlu0 1
  %250 = vperm.xlu0 %249, %v32
  %v251 = vpop.permute.xlu0 %250
  %253 = vset.pattern.permute.xlu0 1
  %254 = vperm.xlu0 %253, %v33
  %v255 = vpop.permute.xlu0 %254
  %257 = vset.pattern.permute.xlu0 1
  %258 = vperm.xlu0 %257, %v34
  %v259 = vpop.permute.xlu0 %258
  %261 = vset.pattern.permute.xlu0 1
  %262 = vperm.xlu0 %261, %v35
  %v263 = vpop.permute.xlu0 %262
  %265 = vset.pattern.permute.xlu0 1
  %266 = vperm.xlu0 %265, %v36
  %v267 = vpop.permute.xlu0 %266
  %269 = vset.pattern.permute.xlu0 1
  %270 = vperm.xlu0 %269, %v37
  %v271 = vpop.permute.xlu0 %270
  %273 = vset.pattern.permute.xlu0 1
  %274 = vperm.xlu0 %273, %v38
  %v275 = vpop.permute.xlu0 %274
  %277 = vset.pattern.permute.xlu0 1
  %278 = vperm.xlu0 %277, %v39
  %v279 = vpop.permute.xlu0 %278
  %281 = vset.pattern.permute.xlu0 1
  %282 = vperm.xlu0 %281, %v40
  %v283 = vpop.permute.xlu0 %282
  %285 = vset.pattern.permute.xlu0 1
  %286 = vperm.xlu0 %285, %v41
  %v287 = vpop.permute.xlu0 %286
  %289 = vset.pattern.permute.xlu0 1
  %290 = vperm.xlu0 %289, %v42
  %v291 = vpop.permute.xlu0 %290
  %293 = vset.pattern.permute.xlu0 1
  %294 = vperm.xlu0 %293, %v43
  %v295 = vpop.permute.xlu0 %294
  %297 = vset.pattern.permute.xlu0 1
  %298 = vperm.xlu0 %297, %v44
  %v299 = vpop.permute.xlu0 %298
  %v301 = vlaneseq
  %v302 = vshrl.u32 %v301, 7
  %v303 = vsub.s32 1, %v302
  %v304 = vrot.slane %v45, %v303
  %v305 = vmul.f32 %v203, %v304
  %v306 = vmul.f32 %v207, %v304
  %v307 = vmul.f32 %v211, %v304
  %v308 = vmul.f32 %v215, %v304
  %v309 = vmul.f32 %v219, %v304
  %v310 = vmul.f32 %v223, %v304
  %v311 = vmul.f32 %v227, %v304
  %v312 = vmul.f32 %v231, %v304
  %v313 = vmul.f32 %v235, %v304
  %v314 = vmul.f32 %v239, %v304
  %v315 = vmul.f32 %v243, %v304
  %v316 = vmul.f32 %v247, %v304
  %v317 = vmul.f32 %v251, %v304
  %v318 = vmul.f32 %v255, %v304
  %v319 = vmul.f32 %v259, %v304
  %v320 = vmul.f32 %v263, %v304
  %v321 = vmul.f32 %v267, %v304
  %v322 = vmul.f32 %v271, %v304
  %v323 = vmul.f32 %v275, %v304
  %v324 = vmul.f32 %v279, %v304
  %v325 = vmul.f32 %v283, %v304
  %v326 = vmul.f32 %v287, %v304
  %v327 = vmul.f32 %v291, %v304
  %v328 = vmul.f32 %v295, %v304
  %v329 = vmul.f32 %v299, %v304
  %v330 = vadd.f32 %v176, %v305
  %v331 = vadd.f32 %v177, %v306
  %v332 = vadd.f32 %v178, %v307
  %v333 = vadd.f32 %v179, %v308
  %v334 = vadd.f32 %v180, %v309
  %v335 = vadd.f32 %v181, %v310
  %v336 = vadd.f32 %v182, %v311
  %v337 = vadd.f32 %v183, %v312
  %v338 = vadd.f32 %v184, %v313
  %v339 = vadd.f32 %v185, %v314
  %v340 = vadd.f32 %v186, %v315
  %v341 = vadd.f32 %v187, %v316
  %v342 = vadd.f32 %v188, %v317
  %v343 = vadd.f32 %v189, %v318
  %v344 = vadd.f32 %v190, %v319
  %v345 = vadd.f32 %v191, %v320
  %v346 = vadd.f32 %v192, %v321
  %v347 = vadd.f32 %v193, %v322
  %v348 = vadd.f32 %v194, %v323
  %v349 = vadd.f32 %v195, %v324
  %v350 = vadd.f32 %v196, %v325
  %v351 = vadd.f32 %v197, %v326
  %v352 = vadd.f32 %v198, %v327
  %v353 = vadd.f32 %v199, %v328
  %v354 = vadd.f32 %v200, %v329
  %v355 = vlaneseq
  %v356 = vshrl.u32 %v355, 7
  %v357 = vsub.s32 0, %v356
  %v358 = vrot.slane %v46, %v357
  %v359 = vadd.f32 %v330, %v358
  %v360 = vadd.f32 %v331, %v358
  %v361 = vadd.f32 %v332, %v358
  %v362 = vadd.f32 %v333, %v358
  %v363 = vadd.f32 %v334, %v358
  %v364 = vadd.f32 %v335, %v358
  %v365 = vadd.f32 %v336, %v358
  %v366 = vadd.f32 %v337, %v358
  %v367 = vadd.f32 %v338, %v358
  %v368 = vadd.f32 %v339, %v358
  %v369 = vadd.f32 %v340, %v358
  %v370 = vadd.f32 %v341, %v358
  %v371 = vadd.f32 %v342, %v358
  %v372 = vadd.f32 %v343, %v358
  %v373 = vadd.f32 %v344, %v358
  %v374 = vadd.f32 %v345, %v358
  %v375 = vadd.f32 %v346, %v358
  %v376 = vadd.f32 %v347, %v358
  %v377 = vadd.f32 %v348, %v358
  %v378 = vadd.f32 %v349, %v358
  %v379 = vadd.f32 %v350, %v358
  %v380 = vadd.f32 %v351, %v358
  %v381 = vadd.f32 %v352, %v358
  %v382 = vadd.f32 %v353, %v358
  %v383 = vadd.f32 %v354, %v358
  %v384 = vmax.f32 %v359, 0.0
  %v385 = vmax.f32 %v360, 0.0
  %v386 = vmax.f32 %v361, 0.0
  %v387 = vmax.f32 %v362, 0.0
  %v388 = vmax.f32 %v363, 0.0
  %v389 = vmax.f32 %v364, 0.0
  %v390 = vmax.f32 %v365, 0.0
  %v391 = vmax.f32 %v366, 0.0
  %v392 = vmax.f32 %v367, 0.0
  %v393 = vmax.f32 %v368, 0.0
  %v394 = vmax.f32 %v369, 0.0
  %v395 = vmax.f32 %v370, 0.0
  %v396 = vmax.f32 %v371, 0.0
  %v397 = vmax.f32 %v372, 0.0
  %v398 = vmax.f32 %v373, 0.0
  %v399 = vmax.f32 %v374, 0.0
  %v400 = vmax.f32 %v375, 0.0
  %v401 = vmax.f32 %v376, 0.0
  %v402 = vmax.f32 %v377, 0.0
  %v403 = vmax.f32 %v378, 0.0
  %v404 = vmax.f32 %v379, 0.0
  %v405 = vmax.f32 %v380, 0.0
  %v406 = vmax.f32 %v381, 0.0
  %v407 = vmax.f32 %v382, 0.0
  %v408 = vmax.f32 %v383, 0.0
  %v409 = vld [vmem:[%s2] sm:$0xff]
  %v410 = vld [vmem:[%s2 + $0x8] sm:$0xff]
  %v411 = vld [vmem:[%s2 + $0x10] sm:$0xff]
  %v412 = vld [vmem:[%s2 + $0x18] sm:$0xff]
  %v413 = vld [vmem:[%s2 + $0x20] sm:$0xff]
  %v414 = vld [vmem:[%s2 + $0x28] sm:$0xff]
  %v415 = vld [vmem:[%s2 + $0x30] sm:$0xff]
  %v416 = vld [vmem:[%s2 + $0x38] sm:$0xff]
  %v417 = vld [vmem:[%s2 + $0x40] sm:$0xff]
  %v418 = vld [vmem:[%s2 + $0x48] sm:$0xff]
  %v419 = vld [vmem:[%s2 + $0x50] sm:$0xff]
  %v420 = vld [vmem:[%s2 + $0x58] sm:$0xff]
  %v421 = vld [vmem:[%s2 + $0x60] sm:$0xff]
  %v422 = vld [vmem:[%s2 + $0x68] sm:$0xff]
  %v423 = vld [vmem:[%s2 + $0x70] sm:$0xff]
  %v424 = vld [vmem:[%s2 + $0x78] sm:$0xff]
  %v425 = vlaneseq
  %v426 = vshrl.u32 %v425, 7
  %v427 = vsub.s32 1, %v426
  %v428 = vrot.slane %v46, %v427
  %429 = vmatprep.subr.mxu0 0.0
  %430 = vmatpush1.msra.mxu0 %v409
  %431 = vmatprep.subr.mxu0 0.0
  %432 = vmatpush1.msra.mxu0 %v410
  %433 = vmatprep.subr.mxu0 0.0
  %434 = vmatpush1.msra.mxu0 %v411
  %435 = vmatprep.subr.mxu0 0.0
  %436 = vmatpush1.msra.mxu0 %v412
  %437 = vmatprep.subr.mxu0 0.0
  %438 = vmatpush1.msra.mxu0 %v413
  %439 = vmatprep.subr.mxu0 0.0
  %440 = vmatpush1.msra.mxu0 %v414
  %441 = vmatprep.subr.mxu0 0.0
  %442 = vmatpush1.msra.mxu0 %v415
  %443 = vmatprep.subr.mxu0 0.0
  %444 = vmatpush1.msra.mxu0 %v416
  %445 = vmatprep.subr.mxu0 0.0
  %446 = vmatpush1.msra.mxu0 %v417
  %447 = vmatprep.subr.mxu0 0.0
  %448 = vmatpush1.msra.mxu0 %v418
  %449 = vmatprep.subr.mxu0 0.0
  %450 = vmatpush1.msra.mxu0 %v419
  %451 = vmatprep.subr.mxu0 0.0
  %452 = vmatpush1.msra.mxu0 %v420
  %453 = vmatprep.subr.mxu0 0.0
  %454 = vmatpush1.msra.mxu0 %v421
  %455 = vmatprep.subr.mxu0 0.0
  %456 = vmatpush1.msra.mxu0 %v422
  %457 = vmatprep.subr.mxu0 0.0
  %458 = vmatpush1.msra.mxu0 %v423
  %459 = vmatprep.subr.mxu0 0.0
  %460 = vmatpush1.msra.mxu0 %v424
  %461 = vmatprep.subr.mxu0 0.0
  %462 = vmatpush1.msra.mxu0 0.0
  %463 = vmatprep.subr.mxu0 0.0
  %464 = vmatpush1.msra.mxu0 0.0
  %465 = vmatprep.subr.mxu0 0.0
  %466 = vmatpush1.msra.mxu0 0.0
  %467 = vmatprep.subr.mxu0 0.0
  %468 = vmatpush1.msra.mxu0 0.0
  %469 = vmatprep.subr.mxu0 0.0
  %470 = vmatpush1.msra.mxu0 0.0
  %471 = vmatprep.subr.mxu0 0.0
  %472 = vmatpush1.msra.mxu0 0.0
  %473 = vmatprep.subr.mxu0 0.0
  %474 = vmatpush1.msra.mxu0 0.0
  %475 = vmatprep.subr.mxu0 0.0
  %476 = vmatpush1.msra.mxu0 0.0
  %477 = vmatprep.subr.mxu0 0.0
  %478 = vmatpush1.msra.mxu0 0.0
  %479 = vmatprep.subr.mxu0 0.0
  %480 = vmatpush1.msra.mxu0 0.0
  %481 = vmatprep.subr.mxu0 0.0
  %482 = vmatpush1.msra.mxu0 0.0
  %483 = vmatprep.subr.mxu0 0.0
  %484 = vmatpush1.msra.mxu0 0.0
  %485 = vmatprep.subr.mxu0 0.0
  %486 = vmatpush1.msra.mxu0 0.0
  %487 = vmatprep.subr.mxu0 0.0
  %488 = vmatpush1.msra.mxu0 0.0
  %489 = vmatprep.subr.mxu0 0.0
  %490 = vmatpush1.msra.mxu0 0.0
  %491 = vmatprep.subr.mxu0 0.0
  %492 = vmatpush1.msra.mxu0 0.0
  %493 = vmatprep.mubr.f32.mxu0 0.0
  %494 = vmatmul.mubr.f32.gmra.mrb[0].mxu0 %v384
  %v495 = vpop.f32.mrb[0].mxu0
  %v496 = vadd.f32 %v428, %v495
  %v497 = vpop.f32.mrb[0].mxu0
  %498 = vmatprep.mubr.f32.mxu0 0.0
  %499 = vmatmul.mubr.f32.gmra.mrb[0].mxu0 %v385
  %v500 = vpop.f32.mrb[0].mxu0
  %v501 = vadd.f32 %v428, %v500
  %v502 = vpop.f32.mrb[0].mxu0
  %503 = vmatprep.mubr.f32.mxu0 0.0
  %504 = vmatmul.mubr.f32.gmra.mrb[0].mxu0 %v386
  %v505 = vpop.f32.mrb[0].mxu0
  %v506 = vadd.f32 %v428, %v505
  %v507 = vpop.f32.mrb[0].mxu0
  %508 = vmatprep.mubr.f32.mxu0 0.0
  %509 = vmatmul.mubr.f32.gmra.mrb[0].mxu0 %v387
  %v510 = vpop.f32.mrb[0].mxu0
  %v511 = vadd.f32 %v428, %v510
  %v512 = vpop.f32.mrb[0].mxu0
  %513 = vmatprep.mubr.f32.mxu0 0.0
  %514 = vmatmul.mubr.f32.gmra.mrb[0].mxu0 %v388
  %v515 = vpop.f32.mrb[0].mxu0
  %v516 = vadd.f32 %v428, %v515
  %v517 = vpop.f32.mrb[0].mxu0
  %518 = vmatprep.mubr.f32.mxu0 0.0
  %519 = vmatmul.mubr.f32.gmra.mrb[0].mxu0 %v389
  %v520 = vpop.f32.mrb[0].mxu0
  %v521 = vadd.f32 %v428, %v520
  %v522 = vpop.f32.mrb[0].mxu0
  %523 = vmatprep.mubr.f32.mxu0 0.0
  %524 = vmatmul.mubr.f32.gmra.mrb[0].mxu0 %v390
  %v525 = vpop.f32.mrb[0].mxu0
  %v526 = vadd.f32 %v428, %v525
  %v527 = vpop.f32.mrb[0].mxu0
  %528 = vmatprep.mubr.f32.mxu0 0.0
  %529 = vmatmul.mubr.f32.gmra.mrb[0].mxu0 %v391
  %v530 = vpop.f32.mrb[0].mxu0
  %v531 = vadd.f32 %v428, %v530
  %v532 = vpop.f32.mrb[0].mxu0
  %533 = vmatprep.mubr.f32.mxu0 0.0
  %534 = vmatmul.mubr.f32.gmra.mrb[0].mxu0 %v392
  %v535 = vpop.f32.mrb[0].mxu0
  %v536 = vadd.f32 %v428, %v535
  %v537 = vpop.f32.mrb[0].mxu0
  %538 = vmatprep.mubr.f32.mxu0 0.0
  %539 = vmatmul.mubr.f32.gmra.mrb[0].mxu0 %v393
  %v540 = vpop.f32.mrb[0].mxu0
  %v541 = vadd.f32 %v428, %v540
  %v542 = vpop.f32.mrb[0].mxu0
  %543 = vmatprep.mubr.f32.mxu0 0.0
  %544 = vmatmul.mubr.f32.gmra.mrb[0].mxu0 %v394
  %v545 = vpop.f32.mrb[0].mxu0
  %v546 = vadd.f32 %v428, %v545
  %v547 = vpop.f32.mrb[0].mxu0
  %548 = vmatprep.mubr.f32.mxu0 0.0
  %549 = vmatmul.mubr.f32.gmra.mrb[0].mxu0 %v395
  %v550 = vpop.f32.mrb[0].mxu0
  %v551 = vadd.f32 %v428, %v550
  %v552 = vpop.f32.mrb[0].mxu0
  %553 = vmatprep.mubr.f32.mxu0 0.0
  %554 = vmatmul.mubr.f32.gmra.mrb[0].mxu0 %v396
  %v555 = vpop.f32.mrb[0].mxu0
  %v556 = vadd.f32 %v428, %v555
  %v557 = vpop.f32.mrb[0].mxu0
  %558 = vmatprep.mubr.f32.mxu0 0.0
  %559 = vmatmul.mubr.f32.gmra.mrb[0].mxu0 %v397
  %v560 = vpop.f32.mrb[0].mxu0
  %v561 = vadd.f32 %v428, %v560
  %v562 = vpop.f32.mrb[0].mxu0
  %563 = vmatprep.mubr.f32.mxu0 0.0
  %564 = vmatmul.mubr.f32.gmra.mrb[0].mxu0 %v398
  %v565 = vpop.f32.mrb[0].mxu0
  %v566 = vadd.f32 %v428, %v565
  %v567 = vpop.f32.mrb[0].mxu0
  %568 = vmatprep.mubr.f32.mxu0 0.0
  %569 = vmatmul.mubr.f32.gmra.mrb[0].mxu0 %v399
  %v570 = vpop.f32.mrb[0].mxu0
  %v571 = vadd.f32 %v428, %v570
  %v572 = vpop.f32.mrb[0].mxu0
  %573 = vmatprep.mubr.f32.mxu0 0.0
  %574 = vmatmul.mubr.f32.gmra.mrb[0].mxu0 %v400
  %v575 = vpop.f32.mrb[0].mxu0
  %v576 = vadd.f32 %v428, %v575
  %v577 = vpop.f32.mrb[0].mxu0
  %578 = vmatprep.mubr.f32.mxu0 0.0
  %579 = vmatmul.mubr.f32.gmra.mrb[0].mxu0 %v401
  %v580 = vpop.f32.mrb[0].mxu0
  %v581 = vadd.f32 %v428, %v580
  %v582 = vpop.f32.mrb[0].mxu0
  %583 = vmatprep.mubr.f32.mxu0 0.0
  %584 = vmatmul.mubr.f32.gmra.mrb[0].mxu0 %v402
  %v585 = vpop.f32.mrb[0].mxu0
  %v586 = vadd.f32 %v428, %v585
  %v587 = vpop.f32.mrb[0].mxu0
  %588 = vmatprep.mubr.f32.mxu0 0.0
  %589 = vmatmul.mubr.f32.gmra.mrb[0].mxu0 %v403
  %v590 = vpop.f32.mrb[0].mxu0
  %v591 = vadd.f32 %v428, %v590
  %v592 = vpop.f32.mrb[0].mxu0
  %593 = vmatprep.mubr.f32.mxu0 0.0
  %594 = vmatmul.mubr.f32.gmra.mrb[0].mxu0 %v404
  %v595 = vpop.f32.mrb[0].mxu0
  %v596 = vadd.f32 %v428, %v595
  %v597 = vpop.f32.mrb[0].mxu0
  %598 = vmatprep.mubr.f32.mxu0 0.0
  %599 = vmatmul.mubr.f32.gmra.mrb[0].mxu0 %v405
  %v600 = vpop.f32.mrb[0].mxu0
  %v601 = vadd.f32 %v428, %v600
  %v602 = vpop.f32.mrb[0].mxu0
  %603 = vmatprep.mubr.f32.mxu0 0.0
  %604 = vmatmul.mubr.f32.gmra.mrb[0].mxu0 %v406
  %v605 = vpop.f32.mrb[0].mxu0
  %v606 = vadd.f32 %v428, %v605
  %v607 = vpop.f32.mrb[0].mxu0
  %608 = vmatprep.mubr.f32.mxu0 0.0
  %609 = vmatmul.mubr.f32.gmra.mrb[0].mxu0 %v407
  %v610 = vpop.f32.mrb[0].mxu0
  %v611 = vadd.f32 %v428, %v610
  %v612 = vpop.f32.mrb[0].mxu0
  %613 = vmatprep.mubr.f32.mxu0 0.0
  %614 = vmatmul.mubr.f32.gmra.mrb[0].mxu0 %v408
  %v615 = vpop.f32.mrb[0].mxu0
  %v616 = vadd.f32 %v428, %v615
  %v617 = vpop.f32.mrb[0].mxu0
  %618 = vdwg.mxu0
  %v619 = vmax.f32 %v496, 0.0
  %v620 = vmax.f32 %v501, 0.0
  %v621 = vmax.f32 %v506, 0.0
  %v622 = vmax.f32 %v511, 0.0
  %v623 = vmax.f32 %v516, 0.0
  %v624 = vmax.f32 %v521, 0.0
  %v625 = vmax.f32 %v526, 0.0
  %v626 = vmax.f32 %v531, 0.0
  %v627 = vmax.f32 %v536, 0.0
  %v628 = vmax.f32 %v541, 0.0
  %v629 = vmax.f32 %v546, 0.0
  %v630 = vmax.f32 %v551, 0.0
  %v631 = vmax.f32 %v556, 0.0
  %v632 = vmax.f32 %v561, 0.0
  %v633 = vmax.f32 %v566, 0.0
  %v634 = vmax.f32 %v571, 0.0
  %v635 = vmax.f32 %v576, 0.0
  %v636 = vmax.f32 %v581, 0.0
  %v637 = vmax.f32 %v586, 0.0
  %v638 = vmax.f32 %v591, 0.0
  %v639 = vmax.f32 %v596, 0.0
  %v640 = vmax.f32 %v601, 0.0
  %v641 = vmax.f32 %v606, 0.0
  %v642 = vmax.f32 %v611, 0.0
  %v643 = vmax.f32 %v616, 0.0
  %v644 = vld [vmem:[%s3] sm:$0xff]
  %v645 = vld [vmem:[%s3 + $0x8] sm:$0xff]
  %v646 = vld [vmem:[%s3 + $0x10] sm:$0xff]
  %v647 = vld [vmem:[%s3 + $0x18] sm:$0xff]
  %v648 = vld [vmem:[%s3 + $0x20] sm:$0xff]
  %v649 = vld [vmem:[%s3 + $0x28] sm:$0xff]
  %v650 = vld [vmem:[%s3 + $0x30] sm:$0xff]
  %v651 = vld [vmem:[%s3 + $0x38] sm:$0xff]
  %v652 = vld [vmem:[%s3 + $0x40] sm:$0xff]
  %v653 = vld [vmem:[%s3 + $0x48] sm:$0xff]
  %v654 = vld [vmem:[%s3 + $0x50] sm:$0xff]
  %v655 = vld [vmem:[%s3 + $0x58] sm:$0xff]
  %v656 = vld [vmem:[%s3 + $0x60] sm:$0xff]
  %v657 = vld [vmem:[%s3 + $0x68] sm:$0xff]
  %v658 = vld [vmem:[%s3 + $0x70] sm:$0xff]
  %v659 = vld [vmem:[%s3 + $0x78] sm:$0xff]
  %v660 = vlaneseq
  %v661 = vshrl.u32 %v660, 7
  %v662 = vsub.s32 2, %v661
  %v663 = vrot.slane %v46, %v662
  %664 = vmatprep.subr.mxu0 0.0
  %665 = vmatpush1.msra.mxu0 %v644
  %666 = vmatprep.subr.mxu0 0.0
  %667 = vmatpush1.msra.mxu0 %v645
  %668 = vmatprep.subr.mxu0 0.0
  %669 = vmatpush1.msra.mxu0 %v646
  %670 = vmatprep.subr.mxu0 0.0
  %671 = vmatpush1.msra.mxu0 %v647
  %672 = vmatprep.subr.mxu0 0.0
  %673 = vmatpush1.msra.mxu0 %v648
  %674 = vmatprep.subr.mxu0 0.0
  %675 = vmatpush1.msra.mxu0 %v649
  %676 = vmatprep.subr.mxu0 0.0
  %677 = vmatpush1.msra.mxu0 %v650
  %678 = vmatprep.subr.mxu0 0.0
  %679 = vmatpush1.msra.mxu0 %v651
  %680 = vmatprep.subr.mxu0 0.0
  %681 = vmatpush1.msra.mxu0 %v652
  %682 = vmatprep.subr.mxu0 0.0
  %683 = vmatpush1.msra.mxu0 %v653
  %684 = vmatprep.subr.mxu0 0.0
  %685 = vmatpush1.msra.mxu0 %v654
  %686 = vmatprep.subr.mxu0 0.0
  %687 = vmatpush1.msra.mxu0 %v655
  %688 = vmatprep.subr.mxu0 0.0
  %689 = vmatpush1.msra.mxu0 %v656
  %690 = vmatprep.subr.mxu0 0.0
  %691 = vmatpush1.msra.mxu0 %v657
  %692 = vmatprep.subr.mxu0 0.0
  %693 = vmatpush1.msra.mxu0 %v658
  %694 = vmatprep.subr.mxu0 0.0
  %695 = vmatpush1.msra.mxu0 %v659
  %696 = vmatprep.subr.mxu0 0.0
  %697 = vmatpush1.msra.mxu0 0.0
  %698 = vmatprep.subr.mxu0 0.0
  %699 = vmatpush1.msra.mxu0 0.0
  %700 = vmatprep.subr.mxu0 0.0
  %701 = vmatpush1.msra.mxu0 0.0
  %702 = vmatprep.subr.mxu0 0.0
  %703 = vmatpush1.msra.mxu0 0.0
  %704 = vmatprep.subr.mxu0 0.0
  %705 = vmatpush1.msra.mxu0 0.0
  %706 = vmatprep.subr.mxu0 0.0
  %707 = vmatpush1.msra.mxu0 0.0
  %708 = vmatprep.subr.mxu0 0.0
  %709 = vmatpush1.msra.mxu0 0.0
  %710 = vmatprep.subr.mxu0 0.0
  %711 = vmatpush1.msra.mxu0 0.0
  %712 = vmatprep.subr.mxu0 0.0
  %713 = vmatpush1.msra.mxu0 0.0
  %714 = vmatprep.subr.mxu0 0.0
  %715 = vmatpush1.msra.mxu0 0.0
  %716 = vmatprep.subr.mxu0 0.0
  %717 = vmatpush1.msra.mxu0 0.0
  %718 = vmatprep.subr.mxu0 0.0
  %719 = vmatpush1.msra.mxu0 0.0
  %720 = vmatprep.subr.mxu0 0.0
  %721 = vmatpush1.msra.mxu0 0.0
  %722 = vmatprep.subr.mxu0 0.0
  %723 = vmatpush1.msra.mxu0 0.0
  %724 = vmatprep.subr.mxu0 0.0
  %725 = vmatpush1.msra.mxu0 0.0
  %726 = vmatprep.subr.mxu0 0.0
  %727 = vmatpush1.msra.mxu0 0.0
  %728 = vmatprep.mubr.f32.mxu0 0.0
  %729 = vmatmul.mubr.f32.gmra.mrb[0].mxu0 %v619
  %v730 = vpop.f32.mrb[0].mxu0
  %v731 = vadd.f32 %v663, %v730
  %v732 = vpop.f32.mrb[0].mxu0
  %733 = vmatprep.mubr.f32.mxu0 0.0
  %734 = vmatmul.mubr.f32.gmra.mrb[0].mxu0 %v620
  %v735 = vpop.f32.mrb[0].mxu0
  %v736 = vadd.f32 %v663, %v735
  %v737 = vpop.f32.mrb[0].mxu0
  %738 = vmatprep.mubr.f32.mxu0 0.0
  %739 = vmatmul.mubr.f32.gmra.mrb[0].mxu0 %v621
  %v740 = vpop.f32.mrb[0].mxu0
  %v741 = vadd.f32 %v663, %v740
  %v742 = vpop.f32.mrb[0].mxu0
  %743 = vmatprep.mubr.f32.mxu0 0.0
  %744 = vmatmul.mubr.f32.gmra.mrb[0].mxu0 %v622
  %v745 = vpop.f32.mrb[0].mxu0
  %v746 = vadd.f32 %v663, %v745
  %v747 = vpop.f32.mrb[0].mxu0
  %748 = vmatprep.mubr.f32.mxu0 0.0
  %749 = vmatmul.mubr.f32.gmra.mrb[0].mxu0 %v623
  %v750 = vpop.f32.mrb[0].mxu0
  %v751 = vadd.f32 %v663, %v750
  %v752 = vpop.f32.mrb[0].mxu0
  %753 = vmatprep.mubr.f32.mxu0 0.0
  %754 = vmatmul.mubr.f32.gmra.mrb[0].mxu0 %v624
  %v755 = vpop.f32.mrb[0].mxu0
  %v756 = vadd.f32 %v663, %v755
  %v757 = vpop.f32.mrb[0].mxu0
  %758 = vmatprep.mubr.f32.mxu0 0.0
  %759 = vmatmul.mubr.f32.gmra.mrb[0].mxu0 %v625
  %v760 = vpop.f32.mrb[0].mxu0
  %v761 = vadd.f32 %v663, %v760
  %v762 = vpop.f32.mrb[0].mxu0
  %763 = vmatprep.mubr.f32.mxu0 0.0
  %764 = vmatmul.mubr.f32.gmra.mrb[0].mxu0 %v626
  %v765 = vpop.f32.mrb[0].mxu0
  %v766 = vadd.f32 %v663, %v765
  %v767 = vpop.f32.mrb[0].mxu0
  %768 = vmatprep.mubr.f32.mxu0 0.0
  %769 = vmatmul.mubr.f32.gmra.mrb[0].mxu0 %v627
  %v770 = vpop.f32.mrb[0].mxu0
  %v771 = vadd.f32 %v663, %v770
  %v772 = vpop.f32.mrb[0].mxu0
  %773 = vmatprep.mubr.f32.mxu0 0.0
  %774 = vmatmul.mubr.f32.gmra.mrb[0].mxu0 %v628
  %v775 = vpop.f32.mrb[0].mxu0
  %v776 = vadd.f32 %v663, %v775
  %v777 = vpop.f32.mrb[0].mxu0
  %778 = vmatprep.mubr.f32.mxu0 0.0
  %779 = vmatmul.mubr.f32.gmra.mrb[0].mxu0 %v629
  %v780 = vpop.f32.mrb[0].mxu0
  %v781 = vadd.f32 %v663, %v780
  %v782 = vpop.f32.mrb[0].mxu0
  %783 = vmatprep.mubr.f32.mxu0 0.0
  %784 = vmatmul.mubr.f32.gmra.mrb[0].mxu0 %v630
  %v785 = vpop.f32.mrb[0].mxu0
  %v786 = vadd.f32 %v663, %v785
  %v787 = vpop.f32.mrb[0].mxu0
  %788 = vmatprep.mubr.f32.mxu0 0.0
  %789 = vmatmul.mubr.f32.gmra.mrb[0].mxu0 %v631
  %v790 = vpop.f32.mrb[0].mxu0
  %v791 = vadd.f32 %v663, %v790
  %v792 = vpop.f32.mrb[0].mxu0
  %793 = vmatprep.mubr.f32.mxu0 0.0
  %794 = vmatmul.mubr.f32.gmra.mrb[0].mxu0 %v632
  %v795 = vpop.f32.mrb[0].mxu0
  %v796 = vadd.f32 %v663, %v795
  %v797 = vpop.f32.mrb[0].mxu0
  %798 = vmatprep.mubr.f32.mxu0 0.0
  %799 = vmatmul.mubr.f32.gmra.mrb[0].mxu0 %v633
  %v800 = vpop.f32.mrb[0].mxu0
  %v801 = vadd.f32 %v663, %v800
  %v802 = vpop.f32.mrb[0].mxu0
  %803 = vmatprep.mubr.f32.mxu0 0.0
  %804 = vmatmul.mubr.f32.gmra.mrb[0].mxu0 %v634
  %v805 = vpop.f32.mrb[0].mxu0
  %v806 = vadd.f32 %v663, %v805
  %v807 = vpop.f32.mrb[0].mxu0
  %808 = vmatprep.mubr.f32.mxu0 0.0
  %809 = vmatmul.mubr.f32.gmra.mrb[0].mxu0 %v635
  %v810 = vpop.f32.mrb[0].mxu0
  %v811 = vadd.f32 %v663, %v810
  %v812 = vpop.f32.mrb[0].mxu0
  %813 = vmatprep.mubr.f32.mxu0 0.0
  %814 = vmatmul.mubr.f32.gmra.mrb[0].mxu0 %v636
  %v815 = vpop.f32.mrb[0].mxu0
  %v816 = vadd.f32 %v663, %v815
  %v817 = vpop.f32.mrb[0].mxu0
  %818 = vmatprep.mubr.f32.mxu0 0.0
  %819 = vmatmul.mubr.f32.gmra.mrb[0].mxu0 %v637
  %v820 = vpop.f32.mrb[0].mxu0
  %v821 = vadd.f32 %v663, %v820
  %v822 = vpop.f32.mrb[0].mxu0
  %823 = vmatprep.mubr.f32.mxu0 0.0
  %824 = vmatmul.mubr.f32.gmra.mrb[0].mxu0 %v638
  %v825 = vpop.f32.mrb[0].mxu0
  %v826 = vadd.f32 %v663, %v825
  %v827 = vpop.f32.mrb[0].mxu0
  %828 = vmatprep.mubr.f32.mxu0 0.0
  %829 = vmatmul.mubr.f32.gmra.mrb[0].mxu0 %v639
  %v830 = vpop.f32.mrb[0].mxu0
  %v831 = vadd.f32 %v663, %v830
  %v832 = vpop.f32.mrb[0].mxu0
  %833 = vmatprep.mubr.f32.mxu0 0.0
  %834 = vmatmul.mubr.f32.gmra.mrb[0].mxu0 %v640
  %v835 = vpop.f32.mrb[0].mxu0
  %v836 = vadd.f32 %v663, %v835
  %v837 = vpop.f32.mrb[0].mxu0
  %838 = vmatprep.mubr.f32.mxu0 0.0
  %839 = vmatmul.mubr.f32.gmra.mrb[0].mxu0 %v641
  %v840 = vpop.f32.mrb[0].mxu0
  %v841 = vadd.f32 %v663, %v840
  %v842 = vpop.f32.mrb[0].mxu0
  %843 = vmatprep.mubr.f32.mxu0 0.0
  %844 = vmatmul.mubr.f32.gmra.mrb[0].mxu0 %v642
  %v845 = vpop.f32.mrb[0].mxu0
  %v846 = vadd.f32 %v663, %v845
  %v847 = vpop.f32.mrb[0].mxu0
  %848 = vmatprep.mubr.f32.mxu0 0.0
  %849 = vmatmul.mubr.f32.gmra.mrb[0].mxu0 %v643
  %v850 = vpop.f32.mrb[0].mxu0
  %v851 = vadd.f32 %v663, %v850
  %v852 = vpop.f32.mrb[0].mxu0
  %853 = vdwg.mxu0
  %vm854 = vcmask 15360
  %855 = vst.msk [vmem:[%s5] sm:$0xff] %vm854, %v731
  %856 = vst.msk [vmem:[%s5 + $0x8] sm:$0xff] %vm854, %v736
  %857 = vst.msk [vmem:[%s5 + $0x10] sm:$0xff] %vm854, %v741
  %858 = vst.msk [vmem:[%s5 + $0x18] sm:$0xff] %vm854, %v746
  %859 = vst.msk [vmem:[%s5 + $0x20] sm:$0xff] %vm854, %v751
  %860 = vst.msk [vmem:[%s5 + $0x28] sm:$0xff] %vm854, %v756
  %861 = vst.msk [vmem:[%s5 + $0x30] sm:$0xff] %vm854, %v761
  %862 = vst.msk [vmem:[%s5 + $0x38] sm:$0xff] %vm854, %v766
  %863 = vst.msk [vmem:[%s5 + $0x40] sm:$0xff] %vm854, %v771
  %864 = vst.msk [vmem:[%s5 + $0x48] sm:$0xff] %vm854, %v776
  %865 = vst.msk [vmem:[%s5 + $0x50] sm:$0xff] %vm854, %v781
  %866 = vst.msk [vmem:[%s5 + $0x58] sm:$0xff] %vm854, %v786
  %867 = vst.msk [vmem:[%s5 + $0x60] sm:$0xff] %vm854, %v791
  %868 = vst.msk [vmem:[%s5 + $0x68] sm:$0xff] %vm854, %v796
  %869 = vst.msk [vmem:[%s5 + $0x70] sm:$0xff] %vm854, %v801
  %870 = vst.msk [vmem:[%s5 + $0x78] sm:$0xff] %vm854, %v806
  %871 = vst.msk [vmem:[%s5 + $0x80] sm:$0xff] %vm854, %v811
  %872 = vst.msk [vmem:[%s5 + $0x88] sm:$0xff] %vm854, %v816
  %873 = vst.msk [vmem:[%s5 + $0x90] sm:$0xff] %vm854, %v821
  %874 = vst.msk [vmem:[%s5 + $0x98] sm:$0xff] %vm854, %v826
  %875 = vst.msk [vmem:[%s5 + $0xa0] sm:$0xff] %vm854, %v831
  %876 = vst.msk [vmem:[%s5 + $0xa8] sm:$0xff] %vm854, %v836
  %877 = vst.msk [vmem:[%s5 + $0xb0] sm:$0xff] %vm854, %v841
  %878 = vst.msk [vmem:[%s5 + $0xb8] sm:$0xff] %vm854, %v846
  %879 = vst.msk [vmem:[%s5 + $0xc0] sm:$0xff] %vm854, %v851
  // Predicated region
  $region22: #{_net_forward_padded.1} parent=0 // pred_check
    _
  $region23: #{_net_forward_padded.1} parent=0 // pred_check_branch
    %881 = sbr.rel (0) target = $region25
  $region24: #{_net_forward_padded.1} parent=0 // pred_region
    _
  $region25: #{_net_forward_padded.1} parent=0 // pred_fallthru
    _
  // Predicated region
  $region26: #{_net_forward_padded.1} parent=0 // pred_check
    _
  $region27: #{_net_forward_padded.1} parent=0 // pred_check_branch
    %883 = sbr.rel (0) target = $region29
  $region28: #{_net_forward_padded.1} parent=0 // pred_region
    _
  $region29: #{_net_forward_padded.1} parent=0 // pred_fallthru
    _

</llo_original>
